<compile_context>
chip_gen: v5e
topology: v5e:2x2
jax: 0.10.0
libtpu: 0.0.40
codegen_flags: <defaults>
</compile_context>

<pallas_src>
import functools

import jax
import jax.numpy as jnp
import numpy as np
from jax import lax
from jax.experimental import pallas as pl
from jax.experimental.pallas import tpu as pltpu

LN_EPS = 1e-5        # PyTorch nn.LayerNorm default
OUT_LANES = 128      # lane-dense output width (3 real columns + zero padding)


def _prosody_kernel(k, pad, T,
                    lens_ref,                                   # scalar-prefetch (SMEM)
                    x_ref, w1_ref, w2_ref, prm_ref,
                    wlin_ref, blin_ref, gb_ref,
                    out_ref):
    b = pl.program_id(0)

    # Unpack the packed per-channel parameter rows (all f32, shape (1, F)).
    prm = prm_ref[...]
    b1, ln1g, ln1b = prm[0:1, :], prm[1:2, :], prm[2:3, :]
    b2, ln2g, ln2b = prm[3:4, :], prm[4:5, :], prm[5:6, :]
    gb = gb_ref[...]                     # (2, F): FiLM gamma row 0, beta row 1
    gamma, beta = gb[0:1, :], gb[1:2, :]

    def conv_im2col(x_bf16, w_flat_ref):
        # "same" padding handled at value level: zero halo rows, k shifted slices
        # concatenated along channels, then one MXU matmul (bf16 in, f32 acc).
        zpad = jnp.zeros((pad, x_bf16.shape[-1]), x_bf16.dtype)
        xp = jnp.concatenate([zpad, x_bf16, zpad], axis=0)          # (T + 2*pad, C)
        xcat = jnp.concatenate([xp[dk:dk + T, :] for dk in range(k)], axis=-1)  # (T, k*C)
        return jnp.dot(xcat, w_flat_ref[...],
                       preferred_element_type=jnp.float32)          # (T, F) f32

    def layer_norm(h, g, bb):
        mu = jnp.mean(h, axis=-1, keepdims=True)
        var = jnp.mean((h - mu) ** 2, axis=-1, keepdims=True)
        return (h - mu) * lax.rsqrt(var + LN_EPS) * g + bb

    # conv1d_1 -> ReLU -> LayerNorm     (dropout_1 = identity in eval mode)
    h = jnp.maximum(conv_im2col(x_ref[...], w1_ref) + b1, 0.0)
    h = layer_norm(h, ln1g, ln1b)

    # conv1d_2 -> ReLU -> LayerNorm     (dropout_2 = identity in eval mode)
    h2 = jnp.maximum(conv_im2col(h.astype(jnp.bfloat16), w2_ref) + b2, 0.0)
    h2 = layer_norm(h2, ln2g, ln2b)

    # FiLM: gamma * x + beta (per-batch, broadcast over time)
    h2 = gamma * h2 + beta

    # linear_layer: (T, F) @ (F, OUT_LANES) + bias   (columns >= 3 are exactly zero)
    out = jnp.dot(h2.astype(jnp.bfloat16), wlin_ref[...],
                  preferred_element_type=jnp.float32) + blin_ref[...]

    # masked_fill(mask.unsqueeze(-1), 0.0): mask rebuilt in-kernel from valid length.
    n_valid = lens_ref[b]
    rows = lax.broadcasted_iota(jnp.int32, (T, OUT_LANES), 0)
    out_ref[...] = jnp.where(rows < n_valid, out, 0.0).astype(out_ref.dtype)


def prosody_predictor(x, mask, gammas, betas, params, kernel_size):
    """x: (B, T, H), mask: (B, T) bool (True = padded), gammas/betas: (B, 1, F) -> (B, T, 3)."""
    B, T, H = x.shape
    F_ = params["w1"].shape[-1]
    k = kernel_size
    pad = (k - 1) // 2

    # Padding mask -> per-batch valid lengths (SMEM scalar prefetch).
    # TODO(synk): assumes a suffix padding mask (FastSpeech-style get_mask_from_lengths);
    #             arbitrary per-position masks would need the full mask passed instead.
    lens = jnp.sum(jnp.logical_not(mask), axis=-1).astype(jnp.int32)          # (B,)

    bf = lambda v: v.astype(jnp.bfloat16)

    # im2col-flattened conv weights (tap-major rows match the in-kernel concat order).
    w1_flat = bf(params["w1"].reshape(k * H, F_))                             # (k*H, F)
    w2_flat = bf(params["w2"].reshape(k * F_, F_))                            # (k*F, F)

    # Pack the six per-channel vectors into one sublane-aligned (8, F) f32 array.
    prm = jnp.stack([params["b1"], params["ln1_g"], params["ln1_b"],
                     params["b2"], params["ln2_g"], params["ln2_b"]],
                    axis=0).astype(jnp.float32)                               # (6, F)
    prm = jnp.pad(prm, ((0, 8 - prm.shape[0]), (0, 0)))                       # (8, F)

    # Lane-dense linear: pad (F, 3) -> (F, OUT_LANES) with zeros.
    wlin_pad = jnp.pad(bf(params["wlin"]), ((0, 0), (0, OUT_LANES - 3)))
    blin_pad = jnp.pad(params["blin"].astype(jnp.float32).reshape(1, 3),
                       ((0, 0), (0, OUT_LANES - 3)))

    # Pack FiLM gammas/betas into a single per-batch (B, 2, F) array.
    gb = jnp.concatenate([gammas.reshape(B, 1, F_), betas.reshape(B, 1, F_)],
                         axis=1).astype(jnp.float32)                          # (B, 2, F)

    inputs = (
        lens,                                                                  # prefetch
        bf(x),
        w1_flat, w2_flat, prm,
        wlin_pad, blin_pad,
        gb,
    )

    full2d = lambda arr: pl.BlockSpec(arr.shape, lambda b, lens: (0, 0))
    per_batch = lambda shape: pl.BlockSpec((None,) + shape, lambda b, lens: (b, 0, 0))

    in_specs = [
        per_batch((T, H)),                        # x (bf16), one batch per grid step
        full2d(w1_flat), full2d(w2_flat),         # im2col conv weights
        full2d(prm),                              # packed biases + LN gamma/beta
        full2d(wlin_pad), full2d(blin_pad),       # linear W (padded), b (padded)
        per_batch((2, F_)),                       # FiLM gamma/beta, per batch
    ]
    out_spec = pl.BlockSpec((None, T, OUT_LANES), lambda b, lens: (b, 0, 0))

    kern = functools.partial(_prosody_kernel, k, pad, T)
    out_padded = pl.pallas_call(
        kern,
        out_shape=jax.ShapeDtypeStruct((B, T, OUT_LANES), jnp.float32),
        grid_spec=pltpu.PrefetchScalarGridSpec(
            num_scalar_prefetch=1,
            grid=(B,),
            in_specs=in_specs,
            out_specs=out_spec,
        ),
        compiler_params=pltpu.CompilerParams(
            dimension_semantics=("parallel",),    # batch items are independent
            vmem_limit_bytes=32 * 1024 * 1024,
        ),
    )(*inputs)
    return out_padded[..., :3]


def prosody_predictor_ref(x, mask, gammas, betas, params, k):
    """Pure-JAX f32 reference (module semantics) for correctness checking."""
    pad = (k - 1) // 2

    def conv(h, w, b):
        T = h.shape[1]
        hp = jnp.pad(h, ((0, 0), (pad, pad), (0, 0)))
        out = sum(jnp.einsum('bti,io->bto', hp[:, dk:dk + T, :], w[dk])
                  for dk in range(k))
        return out + b

    def ln(h, g, b):
        mu = h.mean(-1, keepdims=True)
        var = ((h - mu) ** 2).mean(-1, keepdims=True)
        return (h - mu) / jnp.sqrt(var + LN_EPS) * g + b

    h = jax.nn.relu(conv(x, params["w1"], params["b1"]))
    h = ln(h, params["ln1_g"], params["ln1_b"])
    h = jax.nn.relu(conv(h, params["w2"], params["b2"]))
    h = ln(h, params["ln2_g"], params["ln2_b"])
    h = gammas * h + betas
    out = h @ params["wlin"] + params["blin"]
    return jnp.where(mask[..., None], 0.0, out)


if __name__ == "__main__":
    # small shapes: batch=2, seq=8, encoder_hidden=32, filter_size=32, kernel_size=3
    B, T, H, F_, k = 2, 8, 32, 32, 3

    key = jax.random.PRNGKey(0)
    keys = jax.random.split(key, 12)
    params = {
        "w1":    0.1 * jax.random.normal(keys[0], (k, H, F_), jnp.float32),
        "b1":    0.1 * jax.random.normal(keys[1], (F_,), jnp.float32),
        "ln1_g": 1.0 + 0.1 * jax.random.normal(keys[2], (F_,), jnp.float32),
        "ln1_b": 0.1 * jax.random.normal(keys[3], (F_,), jnp.float32),
        "w2":    0.1 * jax.random.normal(keys[4], (k, F_, F_), jnp.float32),
        "b2":    0.1 * jax.random.normal(keys[5], (F_,), jnp.float32),
        "ln2_g": 1.0 + 0.1 * jax.random.normal(keys[6], (F_,), jnp.float32),
        "ln2_b": 0.1 * jax.random.normal(keys[7], (F_,), jnp.float32),
        "wlin":  0.1 * jax.random.normal(keys[8], (F_, 3), jnp.float32),
        "blin":  0.1 * jax.random.normal(keys[9], (3,), jnp.float32),
    }
    x = jax.random.normal(keys[10], (B, T, H), jnp.float32)
    gk, bk, _ = jax.random.split(keys[11], 3)
    gammas = 1.0 + 0.1 * jax.random.normal(gk, (B, 1, F_), jnp.float32)
    betas = 0.1 * jax.random.normal(bk, (B, 1, F_), jnp.float32)
    # padding mask: True = padded position (zeroed in output); suffix mask from lengths
    mask = jnp.arange(T)[None, :] >= jnp.array([T, T - 2])[:, None]    # (B, T) bool

    out = prosody_predictor(x, mask, gammas, betas, params, k)
    out = jax.block_until_ready(out)

    ref = prosody_predictor_ref(x, mask, gammas, betas, params, k)
    assert out.shape == (B, T, 3)
    # bf16 MXU inputs with f32 accumulation -> compare against the f32 reference
    # with a bf16-appropriate tolerance.
    np.testing.assert_allclose(np.asarray(out), np.asarray(ref), atol=2e-2, rtol=2e-2)
    print("KERNEL_OK")
</pallas_src>

<mosaic_0001>
module attributes {stable_mosaic.version = 11 : i64} {
  func.func @_prosody_kernel(%arg0: i32, %arg1: memref<2xi32, #tpu.memory_space<smem>>, %arg2: memref<1x8x32xbf16, #tpu.memory_space<vmem>>, %arg3: memref<96x32xbf16, #tpu.memory_space<vmem>>, %arg4: memref<96x32xbf16, #tpu.memory_space<vmem>>, %arg5: memref<8x32xf32, #tpu.memory_space<vmem>>, %arg6: memref<32x128xbf16, #tpu.memory_space<vmem>>, %arg7: memref<1x128xf32, #tpu.memory_space<vmem>>, %arg8: memref<1x2x32xf32, #tpu.memory_space<vmem>>, %arg9: memref<1x8x128xf32, #tpu.memory_space<vmem>>) attributes {dimension_semantics = [#tpu.dimension_semantics<parallel>], iteration_bounds = array<i64: 2>, scalar_prefetch = 1 : i64, scratch_operands = 0 : i64, tpu.core_type = #tpu.core_type<tc>, window_params = [{transform_indices = @transform_0, window_bounds = array<i64: 1, 8, 32>}, {pipeline_mode = #tpu.pipeline_mode<synchronous>, transform_indices = @transform_1, window_bounds = array<i64: 96, 32>}, {pipeline_mode = #tpu.pipeline_mode<synchronous>, transform_indices = @transform_2, window_bounds = array<i64: 96, 32>}, {pipeline_mode = #tpu.pipeline_mode<synchronous>, transform_indices = @transform_3, window_bounds = array<i64: 8, 32>}, {pipeline_mode = #tpu.pipeline_mode<synchronous>, transform_indices = @transform_4, window_bounds = array<i64: 32, 128>}, {pipeline_mode = #tpu.pipeline_mode<synchronous>, transform_indices = @transform_5, window_bounds = array<i64: 1, 128>}, {transform_indices = @transform_6, window_bounds = array<i64: 1, 2, 32>}, {transform_indices = @transform_7, window_bounds = array<i64: 1, 8, 128>}]} {
    %c0 = arith.constant 0 : index
    %c0_0 = arith.constant 0 : index
    %0 = vector.load %arg5[%c0, %c0_0] : memref<8x32xf32, #tpu.memory_space<vmem>>, vector<8x32xf32>
    %1 = vector.extract_strided_slice %0 {offsets = [0, 0], sizes = [1, 32], strides = [1, 1]} : vector<8x32xf32> to vector<1x32xf32>
    %2 = vector.extract_strided_slice %0 {offsets = [1, 0], sizes = [1, 32], strides = [1, 1]} : vector<8x32xf32> to vector<1x32xf32>
    %3 = vector.extract_strided_slice %0 {offsets = [2, 0], sizes = [1, 32], strides = [1, 1]} : vector<8x32xf32> to vector<1x32xf32>
    %4 = vector.extract_strided_slice %0 {offsets = [3, 0], sizes = [1, 32], strides = [1, 1]} : vector<8x32xf32> to vector<1x32xf32>
    %5 = vector.extract_strided_slice %0 {offsets = [4, 0], sizes = [1, 32], strides = [1, 1]} : vector<8x32xf32> to vector<1x32xf32>
    %6 = vector.extract_strided_slice %0 {offsets = [5, 0], sizes = [1, 32], strides = [1, 1]} : vector<8x32xf32> to vector<1x32xf32>
    %c0_1 = arith.constant 0 : index
    %c0_2 = arith.constant 0 : index
    %c0_3 = arith.constant 0 : index
    %7 = vector.load %arg8[%c0_1, %c0_2, %c0_3] : memref<1x2x32xf32, #tpu.memory_space<vmem>>, vector<1x2x32xf32>
    %8 = vector.shape_cast %7 : vector<1x2x32xf32> to vector<2x32xf32>
    %9 = vector.extract_strided_slice %8 {offsets = [0, 0], sizes = [1, 32], strides = [1, 1]} : vector<2x32xf32> to vector<1x32xf32>
    %10 = vector.extract_strided_slice %8 {offsets = [1, 0], sizes = [1, 32], strides = [1, 1]} : vector<2x32xf32> to vector<1x32xf32>
    %c0_4 = arith.constant 0 : index
    %c0_5 = arith.constant 0 : index
    %c0_6 = arith.constant 0 : index
    %11 = vector.load %arg2[%c0_4, %c0_5, %c0_6] : memref<1x8x32xbf16, #tpu.memory_space<vmem>>, vector<1x8x32xbf16>
    %12 = vector.shape_cast %11 : vector<1x8x32xbf16> to vector<8x32xbf16>
    %cst = arith.constant 0.000000e+00 : bf16
    %13 = vector.broadcast %cst : bf16 to vector<1x32xbf16>
    %14 = tpu.concatenate %13, %12, %13 in 0 : vector<1x32xbf16>, vector<8x32xbf16>, vector<1x32xbf16> -> vector<10x32xbf16>
    %15 = vector.extract_strided_slice %14 {offsets = [0, 0], sizes = [8, 32], strides = [1, 1]} : vector<10x32xbf16> to vector<8x32xbf16>
    %16 = vector.extract_strided_slice %14 {offsets = [1, 0], sizes = [8, 32], strides = [1, 1]} : vector<10x32xbf16> to vector<8x32xbf16>
    %17 = vector.extract_strided_slice %14 {offsets = [2, 0], sizes = [8, 32], strides = [1, 1]} : vector<10x32xbf16> to vector<8x32xbf16>
    %18 = tpu.concatenate %15, %16, %17 in 1 : vector<8x32xbf16>, vector<8x32xbf16>, vector<8x32xbf16> -> vector<8x96xbf16>
    %c0_7 = arith.constant 0 : index
    %c0_8 = arith.constant 0 : index
    %19 = vector.load %arg3[%c0_7, %c0_8] : memref<96x32xbf16, #tpu.memory_space<vmem>>, vector<96x32xbf16>
    %cst_9 = arith.constant dense<0.000000e+00> : vector<8x32xf32>
    %20 = tpu.matmul %18, %19, %cst_9 {dimension_numbers = #tpu.dot_dimension_numbers<[1], [0], [0], [1], [0, 0, 1, 1], [], []>} : vector<8x96xbf16>, vector<96x32xbf16>, vector<8x32xf32> -> vector<8x32xf32>
    %21 = vector.broadcast %1 : vector<1x32xf32> to vector<8x32xf32>
    %22 = arith.addf %20, %21 : vector<8x32xf32>
    %cst_10 = arith.constant 0.000000e+00 : f32
    %23 = vector.broadcast %cst_10 : f32 to vector<8x32xf32>
    %24 = arith.maximumf %22, %23 : vector<8x32xf32>
    %cst_11 = arith.constant dense<0.000000e+00> : vector<8xf32>
    %25 = vector.multi_reduction <add>, %24, %cst_11 [1] : vector<8x32xf32> to vector<8xf32>
    %26 = vector.shape_cast %25 : vector<8xf32> to vector<8x1xf32>
    %cst_12 = arith.constant 3.200000e+01 : f32
    %27 = vector.broadcast %cst_12 : f32 to vector<8x1xf32>
    %28 = arith.divf %26, %27 : vector<8x1xf32>
    %29 = vector.broadcast %28 : vector<8x1xf32> to vector<8x32xf32>
    %30 = arith.subf %24, %29 : vector<8x32xf32>
    %31 = arith.mulf %30, %30 : vector<8x32xf32>
    %cst_13 = arith.constant dense<0.000000e+00> : vector<8xf32>
    %32 = vector.multi_reduction <add>, %31, %cst_13 [1] : vector<8x32xf32> to vector<8xf32>
    %33 = vector.shape_cast %32 : vector<8xf32> to vector<8x1xf32>
    %cst_14 = arith.constant 3.200000e+01 : f32
    %34 = vector.broadcast %cst_14 : f32 to vector<8x1xf32>
    %35 = arith.divf %33, %34 : vector<8x1xf32>
    %36 = vector.broadcast %28 : vector<8x1xf32> to vector<8x32xf32>
    %37 = arith.subf %24, %36 : vector<8x32xf32>
    %cst_15 = arith.constant 9.99999974E-6 : f32
    %38 = vector.broadcast %cst_15 : f32 to vector<8x1xf32>
    %39 = arith.addf %35, %38 : vector<8x1xf32>
    %40 = math.rsqrt %39 : vector<8x1xf32>
    %41 = vector.broadcast %40 : vector<8x1xf32> to vector<8x32xf32>
    %42 = arith.mulf %37, %41 : vector<8x32xf32>
    %43 = vector.broadcast %2 : vector<1x32xf32> to vector<8x32xf32>
    %44 = arith.mulf %42, %43 : vector<8x32xf32>
    %45 = vector.broadcast %3 : vector<1x32xf32> to vector<8x32xf32>
    %46 = arith.addf %44, %45 : vector<8x32xf32>
    %47 = arith.truncf %46 : vector<8x32xf32> to vector<8x32xbf16>
    %cst_16 = arith.constant 0.000000e+00 : bf16
    %48 = vector.broadcast %cst_16 : bf16 to vector<1x32xbf16>
    %49 = tpu.concatenate %48, %47, %48 in 0 : vector<1x32xbf16>, vector<8x32xbf16>, vector<1x32xbf16> -> vector<10x32xbf16>
    %50 = vector.extract_strided_slice %49 {offsets = [0, 0], sizes = [8, 32], strides = [1, 1]} : vector<10x32xbf16> to vector<8x32xbf16>
    %51 = vector.extract_strided_slice %49 {offsets = [1, 0], sizes = [8, 32], strides = [1, 1]} : vector<10x32xbf16> to vector<8x32xbf16>
    %52 = vector.extract_strided_slice %49 {offsets = [2, 0], sizes = [8, 32], strides = [1, 1]} : vector<10x32xbf16> to vector<8x32xbf16>
    %53 = tpu.concatenate %50, %51, %52 in 1 : vector<8x32xbf16>, vector<8x32xbf16>, vector<8x32xbf16> -> vector<8x96xbf16>
    %c0_17 = arith.constant 0 : index
    %c0_18 = arith.constant 0 : index
    %54 = vector.load %arg4[%c0_17, %c0_18] : memref<96x32xbf16, #tpu.memory_space<vmem>>, vector<96x32xbf16>
    %cst_19 = arith.constant dense<0.000000e+00> : vector<8x32xf32>
    %55 = tpu.matmul %53, %54, %cst_19 {dimension_numbers = #tpu.dot_dimension_numbers<[1], [0], [0], [1], [0, 0, 1, 1], [], []>} : vector<8x96xbf16>, vector<96x32xbf16>, vector<8x32xf32> -> vector<8x32xf32>
    %56 = vector.broadcast %4 : vector<1x32xf32> to vector<8x32xf32>
    %57 = arith.addf %55, %56 : vector<8x32xf32>
    %cst_20 = arith.constant 0.000000e+00 : f32
    %58 = vector.broadcast %cst_20 : f32 to vector<8x32xf32>
    %59 = arith.maximumf %57, %58 : vector<8x32xf32>
    %cst_21 = arith.constant dense<0.000000e+00> : vector<8xf32>
    %60 = vector.multi_reduction <add>, %59, %cst_21 [1] : vector<8x32xf32> to vector<8xf32>
    %61 = vector.shape_cast %60 : vector<8xf32> to vector<8x1xf32>
    %cst_22 = arith.constant 3.200000e+01 : f32
    %62 = vector.broadcast %cst_22 : f32 to vector<8x1xf32>
    %63 = arith.divf %61, %62 : vector<8x1xf32>
    %64 = vector.broadcast %63 : vector<8x1xf32> to vector<8x32xf32>
    %65 = arith.subf %59, %64 : vector<8x32xf32>
    %66 = arith.mulf %65, %65 : vector<8x32xf32>
    %cst_23 = arith.constant dense<0.000000e+00> : vector<8xf32>
    %67 = vector.multi_reduction <add>, %66, %cst_23 [1] : vector<8x32xf32> to vector<8xf32>
    %68 = vector.shape_cast %67 : vector<8xf32> to vector<8x1xf32>
    %cst_24 = arith.constant 3.200000e+01 : f32
    %69 = vector.broadcast %cst_24 : f32 to vector<8x1xf32>
    %70 = arith.divf %68, %69 : vector<8x1xf32>
    %71 = vector.broadcast %63 : vector<8x1xf32> to vector<8x32xf32>
    %72 = arith.subf %59, %71 : vector<8x32xf32>
    %cst_25 = arith.constant 9.99999974E-6 : f32
    %73 = vector.broadcast %cst_25 : f32 to vector<8x1xf32>
    %74 = arith.addf %70, %73 : vector<8x1xf32>
    %75 = math.rsqrt %74 : vector<8x1xf32>
    %76 = vector.broadcast %75 : vector<8x1xf32> to vector<8x32xf32>
    %77 = arith.mulf %72, %76 : vector<8x32xf32>
    %78 = vector.broadcast %5 : vector<1x32xf32> to vector<8x32xf32>
    %79 = arith.mulf %77, %78 : vector<8x32xf32>
    %80 = vector.broadcast %6 : vector<1x32xf32> to vector<8x32xf32>
    %81 = arith.addf %79, %80 : vector<8x32xf32>
    %82 = vector.broadcast %9 : vector<1x32xf32> to vector<8x32xf32>
    %83 = arith.mulf %82, %81 : vector<8x32xf32>
    %84 = vector.broadcast %10 : vector<1x32xf32> to vector<8x32xf32>
    %85 = arith.addf %83, %84 : vector<8x32xf32>
    %86 = arith.truncf %85 : vector<8x32xf32> to vector<8x32xbf16>
    %c0_26 = arith.constant 0 : index
    %c0_27 = arith.constant 0 : index
    %87 = vector.load %arg6[%c0_26, %c0_27] : memref<32x128xbf16, #tpu.memory_space<vmem>>, vector<32x128xbf16>
    %cst_28 = arith.constant dense<0.000000e+00> : vector<8x128xf32>
    %88 = tpu.matmul %86, %87, %cst_28 {dimension_numbers = #tpu.dot_dimension_numbers<[1], [0], [0], [1], [0, 0, 1, 1], [], []>} : vector<8x32xbf16>, vector<32x128xbf16>, vector<8x128xf32> -> vector<8x128xf32>
    %c0_29 = arith.constant 0 : index
    %c0_30 = arith.constant 0 : index
    %89 = vector.load %arg7[%c0_29, %c0_30] : memref<1x128xf32, #tpu.memory_space<vmem>>, vector<1x128xf32>
    %90 = vector.broadcast %89 : vector<1x128xf32> to vector<8x128xf32>
    %91 = arith.addf %88, %90 : vector<8x128xf32>
    %92 = arith.index_cast %arg0 : i32 to index
    %93 = memref.load %arg1[%92] : memref<2xi32, #tpu.memory_space<smem>>
    %94 = tpu.iota {dimensions = array<i32: 0>} : vector<8x128xi32>
    %95 = vector.broadcast %93 : i32 to vector<8x128xi32>
    %96 = arith.cmpi slt, %94, %95 : vector<8x128xi32>
    %cst_31 = arith.constant 0.000000e+00 : f32
    %97 = vector.broadcast %cst_31 : f32 to vector<8x128xf32>
    %98 = arith.select %96, %91, %97 : vector<8x128xi1>, vector<8x128xf32>
    %c0_32 = arith.constant 0 : index
    %c0_33 = arith.constant 0 : index
    %c0_34 = arith.constant 0 : index
    %99 = vector.load %arg9[%c0_32, %c0_33, %c0_34] : memref<1x8x128xf32, #tpu.memory_space<vmem>>, vector<1x8x128xf32>
    %100 = vector.shape_cast %99 : vector<1x8x128xf32> to vector<8x128xf32>
    %101 = vector.shape_cast %98 : vector<8x128xf32> to vector<1x8x128xf32>
    tpu.vector_store %arg9[%c0_32, %c0_33, %c0_34], %101 {strides = array<i32>} : memref<1x8x128xf32, #tpu.memory_space<vmem>>, vector<1x8x128xf32>,
    return
  }
  func.func @transform_0(%arg0: i32, %arg1: memref<2xi32, #tpu.memory_space<smem>>) -> (i32, i32, i32) {
    %c0_i32 = arith.constant 0 : i32
    %c0_i32_0 = arith.constant 0 : i32
    %c0_i32_1 = arith.constant 0 : i32
    return %arg0, %c0_i32, %c0_i32_0 : i32, i32, i32
  }
  func.func @transform_1(%arg0: i32, %arg1: memref<2xi32, #tpu.memory_space<smem>>) -> (i32, i32) {
    %c0_i32 = arith.constant 0 : i32
    %c0_i32_0 = arith.constant 0 : i32
    %c0_i32_1 = arith.constant 0 : i32
    return %c0_i32, %c0_i32_0 : i32, i32
  }
  func.func @transform_2(%arg0: i32, %arg1: memref<2xi32, #tpu.memory_space<smem>>) -> (i32, i32) {
    %c0_i32 = arith.constant 0 : i32
    %c0_i32_0 = arith.constant 0 : i32
    %c0_i32_1 = arith.constant 0 : i32
    return %c0_i32, %c0_i32_0 : i32, i32
  }
  func.func @transform_3(%arg0: i32, %arg1: memref<2xi32, #tpu.memory_space<smem>>) -> (i32, i32) {
    %c0_i32 = arith.constant 0 : i32
    %c0_i32_0 = arith.constant 0 : i32
    %c0_i32_1 = arith.constant 0 : i32
    return %c0_i32, %c0_i32_0 : i32, i32
  }
  func.func @transform_4(%arg0: i32, %arg1: memref<2xi32, #tpu.memory_space<smem>>) -> (i32, i32) {
    %c0_i32 = arith.constant 0 : i32
    %c0_i32_0 = arith.constant 0 : i32
    %c0_i32_1 = arith.constant 0 : i32
    return %c0_i32, %c0_i32_0 : i32, i32
  }
  func.func @transform_5(%arg0: i32, %arg1: memref<2xi32, #tpu.memory_space<smem>>) -> (i32, i32) {
    %c0_i32 = arith.constant 0 : i32
    %c0_i32_0 = arith.constant 0 : i32
    %c0_i32_1 = arith.constant 0 : i32
    return %c0_i32, %c0_i32_0 : i32, i32
  }
  func.func @transform_6(%arg0: i32, %arg1: memref<2xi32, #tpu.memory_space<smem>>) -> (i32, i32, i32) {
    %c0_i32 = arith.constant 0 : i32
    %c0_i32_0 = arith.constant 0 : i32
    %c0_i32_1 = arith.constant 0 : i32
    return %arg0, %c0_i32, %c0_i32_0 : i32, i32, i32
  }
  func.func @transform_7(%arg0: i32, %arg1: memref<2xi32, #tpu.memory_space<smem>>) -> (i32, i32, i32) {
    %c0_i32 = arith.constant 0 : i32
    %c0_i32_0 = arith.constant 0 : i32
    %c0_i32_1 = arith.constant 0 : i32
    return %arg0, %c0_i32, %c0_i32_0 : i32, i32, i32
  }
}

</mosaic_0001>

<llo_original>
// kernel: tpu_custom_call.1
$region0: #{tpu_custom_call.1}
  #allocation0 [shape = 'u32[]', space=smem, size = 0x4, offset = 0x4, fixed_abs, tag = 'smem constant byte address 0x4 - core index']
  #allocation1 [shape = 'u32[72,128]{1,0:T(1,128)}', space=vmem, size = 0x9000, scoped, tag = 'internal scratch']
  #allocation2 [shape = 's32[1]{0}', space=sflag, size = 0x4, scoped, tag = 'scoped memory for tpu_custom_call.1']
  #allocation3 [shape = 'u8[512]{0}', space=smem, size = 0x200, scoped, tag = 'prefetched SMEM operand 0']
  %s0 = inlined_call_operand.vmem [shape: s32[2], index: 0, kind: input, shape index: {}]
  %s1 = inlined_call_operand.vmem [shape: bf16[2,8,32], index: 1, kind: input, shape index: {}]
  %s2 = inlined_call_operand.vmem [shape: bf16[96,32], index: 2, kind: input, shape index: {}]
  %s3 = inlined_call_operand.vmem [shape: bf16[96,32], index: 3, kind: input, shape index: {}]
  %s4 = inlined_call_operand.vmem [shape: f32[8,32], index: 4, kind: input, shape index: {}]
  %s5 = inlined_call_operand.vmem [shape: bf16[32,128], index: 5, kind: input, shape index: {}]
  %s6 = inlined_call_operand.vmem [shape: f32[1,128], index: 6, kind: input, shape index: {}]
  %s7 = inlined_call_operand.vmem [shape: f32[2,2,32], index: 7, kind: input, shape index: {}]
  %s8 = inlined_call_operand.hbm [shape: f32[2,8,128], index: 8, kind: output, shape index: {}]
  %s9 = sld [smem:[#allocation0]]
  $region61: #{tpu_custom_call.1} parent=0
    _
  %s11 = ssub.s32 1, %s9
  %s12 = scalar_select 0, %s11, %s9
  %s14 = sshll.u32 %s0, 4
  %s15 = int_to_ptr.vmem [resolvable:$true] %s14
  %17 = dma.vmem_to_smem %s15, 16, [#allocation3], [#allocation2]
  %19 = dma.done [#allocation2], 16
  %20 = sfence
  $region1: #{tpu_custom_call.1} parent=0
    #allocation4 [shape = 'u8[8192]{0}', space=vmem, size = 0x2000, scoped, tag = 'output window, operand 0']
    #allocation5 [shape = 's32[2]{0}', space=sflag, size = 0x8, scoped, tag = 'scoped memory for tpu_custom_call.1']
    %21 = vsyncpa [#allocation5], 0
    %s22 = scalar_lea.sflag [#allocation5], 1
    %23 = vsyncpa %s22, 0
    loop: start=0, step=1, limit=4
    $region2: #{tpu_custom_call.1} parent=1 // loop_pre_header
      _
    $region3: #{tpu_custom_call.1} parent=1 // loop_header
      %s25 = sphi 0, %s29
      %p26 = scmp.ge.s32.totalorder %s25, 4
      %s35 = sphi 0, %s37
      %s38 = sphi 0, %s35
      %s39 = sphi 0, %s38
      %s55 = sphi 0, %s39
      %s59 = sphi 0, %s59
      %s61 = sphi 0, %s59
      %s62 = sphi 0, %s61
      %s76 = sphi 0, %s62
      %s80 = sphi 0, %s80
      %s82 = sphi 0, %s80
      %s83 = sphi 0, %s82
      %s97 = sphi 0, %s83
      %s101 = sphi 0, %s101
      %s103 = sphi 0, %s101
      %s104 = sphi 0, %s103
      %s118 = sphi 0, %s104
      %s122 = sphi 0, %s122
      %s124 = sphi 0, %s122
      %s125 = sphi 0, %s124
      %s139 = sphi 0, %s125
      %s143 = sphi 0, %s143
      %s145 = sphi 0, %s143
      %s146 = sphi 0, %s145
      %s160 = sphi 0, %s146
      %s166 = sphi 0, %s168
      %s169 = sphi 0, %s166
      %s170 = sphi 0, %s169
      %s186 = sphi 0, %s170
      %s192 = sphi 0, %s194
      %s195 = sphi 0, %s192
      %s196 = sphi 0, %s195
      %s212 = sphi 0, %s196
    $region4: #{tpu_custom_call.1} parent=1 // loop_header_branch
      %28 = sbr.rel (%p26) target = $region8
    $region5: #{tpu_custom_call.1} parent=1 // loop_body
      %s30 = ssub.s32 %s25, 1
      %s31 = ssub.s32 %s25, 2
      %s32 = sadd.s32 %s25, 1
      %s33 = ssub.s32 %s25, %s32
      %p34 = scmp.eq.s32.totalorder %s33, 0
      %s36 = sadd.s32 %s35, 1
      %s37 = scalar_select %p34, %s35, %s36
      %p40 = pneg %p34
      %p41 = scmp.eq.s32.totalorder %s25, 1
      %p42 = por %p40, %p41
      %p43 = scmp.ne.s32.totalorder %s35, %s38
      %p44 = scmp.eq.s32.totalorder %s25, 0
      %p45 = por %p43, %p44
      %p46 = scmp.ne.s32.totalorder %s35, %s38
      %p47 = scmp.eq.s32.totalorder %s30, 1
      %p48 = por %p46, %p47
      %p49 = scmp.ne.s32.totalorder %s38, %s39
      %p50 = scmp.eq.s32.totalorder %s30, 0
      %p51 = por %p49, %p50
      %p52 = scmp.ne.s32.totalorder %s38, %s39
      %p53 = scmp.eq.s32.totalorder %s31, 1
      %p54 = por %p52, %p53
      %p56 = scmp.ne.s32.totalorder %s39, %s55
      %p57 = scmp.eq.s32.totalorder %s31, 0
      %p58 = por %p56, %p57
      %s60 = sadd.s32 %s59, 1
      %p63 = scmp.eq.s32.totalorder %s25, 1
      %p64 = scmp.ne.s32.totalorder %s59, %s61
      %p65 = scmp.eq.s32.totalorder %s25, 0
      %p66 = por %p64, %p65
      %p67 = scmp.ne.s32.totalorder %s59, %s61
      %p68 = scmp.eq.s32.totalorder %s30, 1
      %p69 = por %p67, %p68
      %p70 = scmp.ne.s32.totalorder %s61, %s62
      %p71 = scmp.eq.s32.totalorder %s30, 0
      %p72 = por %p70, %p71
      %p73 = scmp.ne.s32.totalorder %s61, %s62
      %p74 = scmp.eq.s32.totalorder %s31, 1
      %p75 = por %p73, %p74
      %p77 = scmp.ne.s32.totalorder %s62, %s76
      %p78 = scmp.eq.s32.totalorder %s31, 0
      %p79 = por %p77, %p78
      %s81 = sadd.s32 %s80, 1
      %p84 = scmp.eq.s32.totalorder %s25, 1
      %p85 = scmp.ne.s32.totalorder %s80, %s82
      %p86 = scmp.eq.s32.totalorder %s25, 0
      %p87 = por %p85, %p86
      %p88 = scmp.ne.s32.totalorder %s80, %s82
      %p89 = scmp.eq.s32.totalorder %s30, 1
      %p90 = por %p88, %p89
      %p91 = scmp.ne.s32.totalorder %s82, %s83
      %p92 = scmp.eq.s32.totalorder %s30, 0
      %p93 = por %p91, %p92
      %p94 = scmp.ne.s32.totalorder %s82, %s83
      %p95 = scmp.eq.s32.totalorder %s31, 1
      %p96 = por %p94, %p95
      %p98 = scmp.ne.s32.totalorder %s83, %s97
      %p99 = scmp.eq.s32.totalorder %s31, 0
      %p100 = por %p98, %p99
      %s102 = sadd.s32 %s101, 1
      %p105 = scmp.eq.s32.totalorder %s25, 1
      %p106 = scmp.ne.s32.totalorder %s101, %s103
      %p107 = scmp.eq.s32.totalorder %s25, 0
      %p108 = por %p106, %p107
      %p109 = scmp.ne.s32.totalorder %s101, %s103
      %p110 = scmp.eq.s32.totalorder %s30, 1
      %p111 = por %p109, %p110
      %p112 = scmp.ne.s32.totalorder %s103, %s104
      %p113 = scmp.eq.s32.totalorder %s30, 0
      %p114 = por %p112, %p113
      %p115 = scmp.ne.s32.totalorder %s103, %s104
      %p116 = scmp.eq.s32.totalorder %s31, 1
      %p117 = por %p115, %p116
      %p119 = scmp.ne.s32.totalorder %s104, %s118
      %p120 = scmp.eq.s32.totalorder %s31, 0
      %p121 = por %p119, %p120
      %s123 = sadd.s32 %s122, 1
      %p126 = scmp.eq.s32.totalorder %s25, 1
      %p127 = scmp.ne.s32.totalorder %s122, %s124
      %p128 = scmp.eq.s32.totalorder %s25, 0
      %p129 = por %p127, %p128
      %p130 = scmp.ne.s32.totalorder %s122, %s124
      %p131 = scmp.eq.s32.totalorder %s30, 1
      %p132 = por %p130, %p131
      %p133 = scmp.ne.s32.totalorder %s124, %s125
      %p134 = scmp.eq.s32.totalorder %s30, 0
      %p135 = por %p133, %p134
      %p136 = scmp.ne.s32.totalorder %s124, %s125
      %p137 = scmp.eq.s32.totalorder %s31, 1
      %p138 = por %p136, %p137
      %p140 = scmp.ne.s32.totalorder %s125, %s139
      %p141 = scmp.eq.s32.totalorder %s31, 0
      %p142 = por %p140, %p141
      %s144 = sadd.s32 %s143, 1
      %p147 = scmp.eq.s32.totalorder %s25, 1
      %p148 = scmp.ne.s32.totalorder %s143, %s145
      %p149 = scmp.eq.s32.totalorder %s25, 0
      %p150 = por %p148, %p149
      %p151 = scmp.ne.s32.totalorder %s143, %s145
      %p152 = scmp.eq.s32.totalorder %s30, 1
      %p153 = por %p151, %p152
      %p154 = scmp.ne.s32.totalorder %s145, %s146
      %p155 = scmp.eq.s32.totalorder %s30, 0
      %p156 = por %p154, %p155
      %p157 = scmp.ne.s32.totalorder %s145, %s146
      %p158 = scmp.eq.s32.totalorder %s31, 1
      %p159 = por %p157, %p158
      %p161 = scmp.ne.s32.totalorder %s146, %s160
      %p162 = scmp.eq.s32.totalorder %s31, 0
      %p163 = por %p161, %p162
      %s164 = ssub.s32 %s25, %s32
      %p165 = scmp.eq.s32.totalorder %s164, 0
      %s167 = sadd.s32 %s166, 1
      %s168 = scalar_select %p165, %s166, %s167
      %p171 = pneg %p165
      %p172 = scmp.eq.s32.totalorder %s25, 1
      %p173 = por %p171, %p172
      %p174 = scmp.ne.s32.totalorder %s166, %s169
      %p175 = scmp.eq.s32.totalorder %s25, 0
      %p176 = por %p174, %p175
      %p177 = scmp.ne.s32.totalorder %s166, %s169
      %p178 = scmp.eq.s32.totalorder %s30, 1
      %p179 = por %p177, %p178
      %p180 = scmp.ne.s32.totalorder %s169, %s170
      %p181 = scmp.eq.s32.totalorder %s30, 0
      %p182 = por %p180, %p181
      %p183 = scmp.ne.s32.totalorder %s169, %s170
      %p184 = scmp.eq.s32.totalorder %s31, 1
      %p185 = por %p183, %p184
      %p187 = scmp.ne.s32.totalorder %s170, %s186
      %p188 = scmp.eq.s32.totalorder %s31, 0
      %p189 = por %p187, %p188
      %s190 = ssub.s32 %s25, %s32
      %p191 = scmp.eq.s32.totalorder %s190, 0
      %s193 = sadd.s32 %s192, 1
      %s194 = scalar_select %p191, %s192, %s193
      %p197 = pneg %p191
      %p198 = scmp.eq.s32.totalorder %s25, 1
      %p199 = por %p197, %p198
      %p200 = scmp.ne.s32.totalorder %s192, %s195
      %p201 = scmp.eq.s32.totalorder %s25, 0
      %p202 = por %p200, %p201
      %p203 = scmp.ne.s32.totalorder %s192, %s195
      %p204 = scmp.eq.s32.totalorder %s30, 1
      %p205 = por %p203, %p204
      %p206 = scmp.ne.s32.totalorder %s195, %s196
      %p207 = scmp.eq.s32.totalorder %s30, 0
      %p208 = por %p206, %p207
      %p209 = scmp.ne.s32.totalorder %s195, %s196
      %p210 = scmp.eq.s32.totalorder %s31, 1
      %p211 = por %p209, %p210
      %p213 = scmp.ne.s32.totalorder %s196, %s212
      %p214 = scmp.eq.s32.totalorder %s31, 0
      %p215 = por %p213, %p214
      %p216 = scmp.le.s32.totalorder 1, %s25
      %p217 = scmp.lt.s32.totalorder %s25, 3
      %p218 = pnand %p216, %p217
      %p219 = pneg %p218
      // Predicated region
      $region9: #{tpu_custom_call.1} parent=5 // pred_check
        _
      $region10: #{tpu_custom_call.1} parent=5 // pred_check_branch
        %221 = sbr.rel (%p218) target = $region12
      $region11: #{tpu_custom_call.1} parent=5 // pred_region
        %s222 = ssub.s32 %s25, 1
        // Predicated region
        $region13: #{tpu_custom_call.1} parent=11 // pred_check
          %p223 = pneg %p72
        $region14: #{tpu_custom_call.1} parent=11 // pred_check_branch
          %225 = sbr.rel (%p223) target = $region16
        $region15: #{tpu_custom_call.1} parent=11 // pred_region
          _
        $region16: #{tpu_custom_call.1} parent=11 // pred_fallthru
          _
        // Predicated region
        $region17: #{tpu_custom_call.1} parent=11 // pred_check
          %p226 = pneg %p93
        $region18: #{tpu_custom_call.1} parent=11 // pred_check_branch
          %228 = sbr.rel (%p226) target = $region20
        $region19: #{tpu_custom_call.1} parent=11 // pred_region
          _
        $region20: #{tpu_custom_call.1} parent=11 // pred_fallthru
          _
        // Predicated region
        $region21: #{tpu_custom_call.1} parent=11 // pred_check
          %p229 = pneg %p114
        $region22: #{tpu_custom_call.1} parent=11 // pred_check_branch
          %231 = sbr.rel (%p229) target = $region24
        $region23: #{tpu_custom_call.1} parent=11 // pred_region
          _
        $region24: #{tpu_custom_call.1} parent=11 // pred_fallthru
          _
        // Predicated region
        $region25: #{tpu_custom_call.1} parent=11 // pred_check
          %p232 = pneg %p135
        $region26: #{tpu_custom_call.1} parent=11 // pred_check_branch
          %234 = sbr.rel (%p232) target = $region28
        $region27: #{tpu_custom_call.1} parent=11 // pred_region
          _
        $region28: #{tpu_custom_call.1} parent=11 // pred_fallthru
          _
        // Predicated region
        $region29: #{tpu_custom_call.1} parent=11 // pred_check
          %p235 = pneg %p156
        $region30: #{tpu_custom_call.1} parent=11 // pred_check_branch
          %237 = sbr.rel (%p235) target = $region32
        $region31: #{tpu_custom_call.1} parent=11 // pred_region
          _
        $region32: #{tpu_custom_call.1} parent=11 // pred_fallthru
          _
      $region12: #{tpu_custom_call.1} parent=5 // pred_fallthru
        _
      %p238 = scmp.lt.s32.totalorder %s25, 2
      // Predicated region
      $region33: #{tpu_custom_call.1} parent=5 // pred_check
        %p239 = pneg %p238
      $region34: #{tpu_custom_call.1} parent=5 // pred_check_branch
        %241 = sbr.rel (%p239) target = $region36
      $region35: #{tpu_custom_call.1} parent=5 // pred_region
        // Predicated region
        $region37: #{tpu_custom_call.1} parent=35 // pred_check
          %p242 = pneg %p45
        $region38: #{tpu_custom_call.1} parent=35 // pred_check_branch
          %244 = sbr.rel (%p242) target = $region40
        $region39: #{tpu_custom_call.1} parent=35 // pred_region
          %p245 = scmp.lt.s32.totalorder %s25, 1
          %s246 = scalar_select %p245, %s25, 1
          %s247 = smul.addr %s246, 4
          %s248 = scalar_lea.vmem %s1, %s247
        $region40: #{tpu_custom_call.1} parent=35 // pred_fallthru
          _
        // Predicated region
        $region41: #{tpu_custom_call.1} parent=35 // pred_check
          %p249 = pneg %p176
        $region42: #{tpu_custom_call.1} parent=35 // pred_check_branch
          %251 = sbr.rel (%p249) target = $region44
        $region43: #{tpu_custom_call.1} parent=35 // pred_region
          %p252 = scmp.lt.s32.totalorder %s25, 1
          %s253 = scalar_select %p252, %s25, 1
          %s254 = smul.addr %s253, 2
          %s255 = scalar_lea.vmem %s7, %s254
        $region44: #{tpu_custom_call.1} parent=35 // pred_fallthru
          _
      $region36: #{tpu_custom_call.1} parent=5 // pred_fallthru
        _
      %p256 = scmp.le.s32.totalorder 1, %s25
      %p257 = scmp.lt.s32.totalorder %s25, 3
      %p258 = pnand %p256, %p257
      %p259 = pneg %p258
      // Predicated region
      $region45: #{tpu_custom_call.1} parent=5 // pred_check
        _
      $region46: #{tpu_custom_call.1} parent=5 // pred_check_branch
        %261 = sbr.rel (%p258) target = $region48
      $region47: #{tpu_custom_call.1} parent=5 // pred_region
        %s262 = ssub.s32 %s25, 1
        %p263 = scmp.lt.s32.totalorder %s30, 1
        %s264 = scalar_select %p263, %s30, 1
        %s265 = smul.addr %s264, 4
        %s266 = scalar_lea.vmem %s1, %s265
        %p267 = pneg %p51
        %p268 = pneg %p48
        %p269 = pneg %p72
        %p270 = pneg %p69
        %p271 = pneg %p93
        %p272 = pneg %p90
        %p273 = pneg %p114
        %p274 = pneg %p111
        %p275 = pneg %p135
        %p276 = pneg %p132
        %p277 = pneg %p156
        %p278 = pneg %p153
        %p279 = scmp.lt.s32.totalorder %s30, 1
        %s280 = scalar_select %p279, %s30, 1
        %s281 = smul.addr %s280, 2
        %s282 = scalar_lea.vmem %s7, %s281
        %p283 = pneg %p182
        %p284 = pneg %p179
        %p285 = pneg %p208
        %p286 = pneg %p205
        %s287 = sand.u32 %s195, 1
        %s288 = scalar_lea.sflag [#allocation5], %s287
        %s289 = sand.u32 %s195, 1
        %s290 = smul.addr %s289, 8
        %s291 = scalar_lea.vmem [#allocation4], %s290
        %p292 = scmp.lt.s32.totalorder %s30, 1
        %s293 = scalar_select %p292, %s30, 1
        %s294 = smul.addr %s293, 4
        %s295 = scalar_lea.vmem %s1, %s294
        %p296 = scmp.lt.s32.totalorder %s30, 1
        %s297 = scalar_select %p296, %s30, 1
        %s298 = smul.addr %s297, 2
        %s299 = scalar_lea.vmem %s7, %s298
        %v301 = vld [vmem:[%s4] sm:$0xff]
        %v302 = vld [vmem:[%s299] sm:$0x3]
        %v303 = vld [vmem:[%s295] sm:$0xf]
        %v305 = vunpack.c.l.b16 %v303
        %v306 = vpack.c.b16 %v305, %v305
        %v308 = vshrl.u32 %v306, 16
        %v310 = vrot.slane %v308, 7
        %v311 = vshll.u32 %v306, 16
        %v313 = vor.u32 %v310, %v311
        %vm315 = vcmask 1040384
        %vm316 = vsmask.f32 256
        %vm317 = vmand %vm315, %vm316
        %v318 = vsel %vm317, 0, %v313
        %vm319 = vcmask 1044480
        %vm320 = vsmask.f32 4352
        %vm321 = vmand %vm319, %vm320
        %v322 = vsel %vm321, %v318, 0
        %v324 = vshrl.u32 %v322, 16
        %v326 = vshll.u32 %v322, 16
        %v328 = vrot.slane %v326, 1
        %v329 = vor.u32 %v324, %v328
        %330 = vrot.lane.b32.xlu0 %v329, 32
        %v331 = vpop.permute.xlu0 %330
        %v333 = vrot.slane %v322, 1
        %334 = vrot.lane.b32.xlu0 %v333, 64
        %v335 = vpop.permute.xlu0 %334
        %vm336 = vcmask 261120
        %v338 = vsel %vm336, %v322, %v331
        %vm339 = vcmask 523264
        %v341 = vsel %vm339, %v338, %v335
        %v342 = vld [vmem:[%s2] sm:$0xf]
        %v343 = vld [vmem:[%s2 + $0x4] sm:$0xf]
        %v344 = vld [vmem:[%s2 + $0x8] sm:$0xf]
        %v345 = vld [vmem:[%s2 + $0xc] sm:$0xf]
        %v346 = vld [vmem:[%s2 + $0x10] sm:$0xf]
        %v347 = vld [vmem:[%s2 + $0x14] sm:$0xf]
        %v348 = vld [vmem:[%s2 + $0x18] sm:$0xf]
        %v349 = vld [vmem:[%s2 + $0x1c] sm:$0xf]
        %v350 = vld [vmem:[%s2 + $0x20] sm:$0xf]
        %v351 = vld [vmem:[%s2 + $0x24] sm:$0xf]
        %v352 = vld [vmem:[%s2 + $0x28] sm:$0xf]
        %v353 = vld [vmem:[%s2 + $0x2c] sm:$0xf]
        %v354 = vperm.slane %v301, 0
        %v367 = vunpack.c.l.b16 %v342
        %v368 = vunpack.c.l.b16 %v343
        %v369 = vunpack.c.l.b16 %v344
        %v370 = vunpack.c.l.b16 %v345
        %v371 = vunpack.c.l.b16 %v346
        %v372 = vunpack.c.l.b16 %v347
        %v373 = vunpack.c.l.b16 %v348
        %v374 = vunpack.c.l.b16 %v349
        %v375 = vunpack.c.l.b16 %v350
        %v376 = vunpack.c.l.b16 %v351
        %v377 = vunpack.c.l.b16 %v352
        %v378 = vunpack.c.l.b16 %v353
        %v379 = vpack.c.b16 %v368, %v367
        %v380 = vpack.c.b16 %v370, %v369
        %v381 = vpack.c.b16 %v372, %v371
        %v382 = vpack.c.b16 %v374, %v373
        %v383 = vpack.c.b16 %v376, %v375
        %v384 = vpack.c.b16 %v378, %v377
        %vm391 = vcmask 785408
        %v392 = vsel %vm391, %v341, 0
        %394 = vmatpush.bf16.msra.mxu0 0
        %395 = vmatpush.bf16.msra.mxu0 0
        %396 = vmatpush.bf16.msra.mxu0 %v384
        %397 = vmatpush.bf16.msra.mxu0 %v383
        %398 = vmatpush.bf16.msra.mxu0 %v382
        %399 = vmatpush.bf16.msra.mxu0 %v381
        %400 = vmatpush.bf16.msra.mxu0 %v380
        %401 = vmatpush.bf16.msra.mxu0 %v379
        %402 = vmatmul.bf16.gmra.mxu0 %v392
        %v403 = vpop.f32.mrf.mxu0
        %v404 = vadd.f32 %v354, %v403
        %v405 = vpop.f32.mrf.mxu0
        %406 = vdwg.mxu0
        %v407 = vmax.f32 %v404, 0.0
        %v408 = vsel %vm336, %v407, 0.0
        %409 = vadd.xlane.f32.xlu0 %v408
        %v410 = vpop.xlane.xlu0 %409
        %v411 = vrcp.pop 32.0
        %v412 = vmul.f32 32.0, %v411
        %v413 = vsub.f32 1.0, %v412
        %v414 = vmul.f32 %v411, %v413
        %v415 = vadd.f32 %v411, %v414
        %vm416 = vweird.f32 %v411
        %v417 = vsel %vm416, %v411, %v415
        %v418 = vmul.f32 %v410, %v417
        %v419 = vsub.f32 %v407, %v418
        %v420 = vmul.f32 %v419, %v419
        %v421 = vsel %vm336, %v420, 0.0
        %422 = vadd.xlane.f32.xlu0 %v421
        %v423 = vpop.xlane.xlu0 %422
        %v424 = vmul.f32 %v423, %v417
        %v425 = vadd.f32 %v424, 1e-05
        %v426 = vrsqrt.pop %v425
        %v427 = vmul.f32 %v426, %v425
        %v428 = vmul.f32 %v427, %v426
        %v429 = vmul.f32 0.5, %v428
        %v430 = vsub.f32 1.5, %v429
        %v431 = vmul.f32 %v426, %v430
        %vm432 = vweird.f32 %v425
        %vm433 = vweird.f32 %v426
        %vm434 = vmor %vm432, %vm433
        %v435 = vsel %vm434, %v426, %v431
        %v436 = vmul.f32 %v419, %v435
        %v437 = vperm.slane %v301, 1
        %v438 = vmul.f32 %v436, %v437
        %v439 = vperm.slane %v301, 2
        %v440 = vadd.f32 %v438, %v439
        %v441 = vpack.c.bf16 %v440, %v440
        %v443 = vunpack.c.l.b16 %v441
        %v444 = vpack.c.b16 %v443, %v443
        %v446 = vshrl.u32 %v444, 16
        %v448 = vrot.slane %v446, 7
        %v449 = vshll.u32 %v444, 16
        %v451 = vor.u32 %v448, %v449
        %v453 = vsel %vm317, 0, %v451
        %v454 = vsel %vm321, %v453, 0
        %v456 = vshrl.u32 %v454, 16
        %v458 = vshll.u32 %v454, 16
        %v460 = vrot.slane %v458, 1
        %v461 = vor.u32 %v456, %v460
        %462 = vrot.lane.b32.xlu0 %v461, 32
        %v463 = vpop.permute.xlu0 %462
        %v465 = vrot.slane %v454, 1
        %466 = vrot.lane.b32.xlu0 %v465, 64
        %v467 = vpop.permute.xlu0 %466
        %v469 = vsel %vm336, %v454, %v463
        %v471 = vsel %vm339, %v469, %v467
        %v472 = vld [vmem:[%s3] sm:$0xf]
        %v473 = vld [vmem:[%s3 + $0x4] sm:$0xf]
        %v474 = vld [vmem:[%s3 + $0x8] sm:$0xf]
        %v475 = vld [vmem:[%s3 + $0xc] sm:$0xf]
        %v476 = vld [vmem:[%s3 + $0x10] sm:$0xf]
        %v477 = vld [vmem:[%s3 + $0x14] sm:$0xf]
        %v478 = vld [vmem:[%s3 + $0x18] sm:$0xf]
        %v479 = vld [vmem:[%s3 + $0x1c] sm:$0xf]
        %v480 = vld [vmem:[%s3 + $0x20] sm:$0xf]
        %v481 = vld [vmem:[%s3 + $0x24] sm:$0xf]
        %v482 = vld [vmem:[%s3 + $0x28] sm:$0xf]
        %v483 = vld [vmem:[%s3 + $0x2c] sm:$0xf]
        %v484 = vperm.slane %v301, 3
        %v497 = vunpack.c.l.b16 %v472
        %v498 = vunpack.c.l.b16 %v473
        %v499 = vunpack.c.l.b16 %v474
        %v500 = vunpack.c.l.b16 %v475
        %v501 = vunpack.c.l.b16 %v476
        %v502 = vunpack.c.l.b16 %v477
        %v503 = vunpack.c.l.b16 %v478
        %v504 = vunpack.c.l.b16 %v479
        %v505 = vunpack.c.l.b16 %v480
        %v506 = vunpack.c.l.b16 %v481
        %v507 = vunpack.c.l.b16 %v482
        %v508 = vunpack.c.l.b16 %v483
        %v509 = vpack.c.b16 %v498, %v497
        %v510 = vpack.c.b16 %v500, %v499
        %v511 = vpack.c.b16 %v502, %v501
        %v512 = vpack.c.b16 %v504, %v503
        %v513 = vpack.c.b16 %v506, %v505
        %v514 = vpack.c.b16 %v508, %v507
        %v521 = vsel %vm391, %v471, 0
        %523 = vmatpush.bf16.msra.mxu0 0
        %524 = vmatpush.bf16.msra.mxu0 0
        %525 = vmatpush.bf16.msra.mxu0 %v514
        %526 = vmatpush.bf16.msra.mxu0 %v513
        %527 = vmatpush.bf16.msra.mxu0 %v512
        %528 = vmatpush.bf16.msra.mxu0 %v511
        %529 = vmatpush.bf16.msra.mxu0 %v510
        %530 = vmatpush.bf16.msra.mxu0 %v509
        %531 = vmatmul.bf16.gmra.mxu0 %v521
        %v532 = vpop.f32.mrf.mxu0
        %v533 = vadd.f32 %v484, %v532
        %v534 = vpop.f32.mrf.mxu0
        %535 = vdwg.mxu0
        %v536 = vmax.f32 %v533, 0.0
        %v537 = vsel %vm336, %v536, 0.0
        %538 = vadd.xlane.f32.xlu0 %v537
        %v539 = vpop.xlane.xlu0 %538
        %v540 = vmul.f32 %v539, %v417
        %v541 = vsub.f32 %v536, %v540
        %v542 = vmul.f32 %v541, %v541
        %v543 = vsel %vm336, %v542, 0.0
        %544 = vadd.xlane.f32.xlu0 %v543
        %v545 = vpop.xlane.xlu0 %544
        %v546 = vmul.f32 %v545, %v417
        %v547 = vadd.f32 %v546, 1e-05
        %v548 = vrsqrt.pop %v547
        %v549 = vmul.f32 %v548, %v547
        %v550 = vmul.f32 %v549, %v548
        %v551 = vmul.f32 0.5, %v550
        %v552 = vsub.f32 1.5, %v551
        %v553 = vmul.f32 %v548, %v552
        %vm554 = vweird.f32 %v547
        %vm555 = vweird.f32 %v548
        %vm556 = vmor %vm554, %vm555
        %v557 = vsel %vm556, %v548, %v553
        %v558 = vmul.f32 %v541, %v557
        %v559 = vperm.slane %v301, 4
        %v560 = vmul.f32 %v558, %v559
        %v561 = vperm.slane %v301, 5
        %v562 = vadd.f32 %v560, %v561
        %v563 = vperm.slane %v302, 0
        %v564 = vmul.f32 %v563, %v562
        %v565 = vperm.slane %v302, 1
        %v566 = vadd.f32 %v564, %v565
        %v567 = vpack.c.bf16 %v566, %v566
        %v568 = vld [vmem:[%s5] sm:$0xf]
        %v569 = vld [vmem:[%s5 + $0x4] sm:$0xf]
        %v570 = vld [vmem:[%s5 + $0x8] sm:$0xf]
        %v571 = vld [vmem:[%s5 + $0xc] sm:$0xf]
        %v572 = vld [vmem:[%s6] sm:$0x1]
        %v574 = vperm.slane %v572, 0
        %v580 = vunpack.c.l.b16 %v568
        %v581 = vunpack.c.l.b16 %v569
        %v582 = vunpack.c.l.b16 %v570
        %v583 = vunpack.c.l.b16 %v571
        %v584 = vpack.c.b16 %v581, %v580
        %v585 = vpack.c.b16 %v583, %v582
        %v589 = vsel %vm336, %v567, 0
        %591 = vmatpush.bf16.msra.mxu0 0
        %592 = vmatpush.bf16.msra.mxu0 0
        %593 = vmatpush.bf16.msra.mxu0 0
        %594 = vmatpush.bf16.msra.mxu0 0
        %595 = vmatpush.bf16.msra.mxu0 0
        %596 = vmatpush.bf16.msra.mxu0 0
        %597 = vmatpush.bf16.msra.mxu0 %v585
        %598 = vmatpush.bf16.msra.mxu0 %v584
        %599 = vmatmul.bf16.gmra.mxu0 %v589
        %v600 = vpop.f32.mrf.mxu0
        %v601 = vadd.f32 %v574, %v600
        %v602 = vpop.f32.mrf.mxu0
        %603 = vdwg.mxu0
        %s604 = sld [smem:[#allocation3 + %s30]]
        %v605 = vlaneseq
        %v606 = vshrl.u32 %v605, 7
        %v607 = vstv %s604
        %vm608 = vcmp.lt.s32.totalorder %v606, %v607
        %v609 = vsel %vm608, %v601, 0.0
        %610 = vst [vmem:[%s291] sm:$0xff] %v609
        %s611 = sand.u32 %s195, 1
        %s612 = scalar_lea.sflag [#allocation5], %s611
        %s613 = sand.u32 %s195, 1
        %s614 = smul.addr %s613, 8
        %s615 = scalar_lea.vmem [#allocation4], %s614
        // Predicated region
        $region49: #{tpu_custom_call.1} parent=47 // pred_check
          %p616 = pneg %p205
        $region50: #{tpu_custom_call.1} parent=47 // pred_check_branch
          %618 = sbr.rel (%p616) target = $region52
        $region51: #{tpu_custom_call.1} parent=47 // pred_region
          %620 = vsyncadd %s612, 0
          %s621 = smul.addr %s30, 8
          %s622 = scalar_lea.hbm %s8, %s621
          %s624 = sshll.u32 %s615, 4
          %s625 = int_to_ptr.vmem [resolvable:$true] %s624
          %s626 = sshll.u32 %s622, 4
          %s627 = int_to_ptr.hbm [resolvable:$true] %s626
          %629 = dma.vmem_to_hbm [thread:$0]  %s625, 128, %s627, %s612
        $region52: #{tpu_custom_call.1} parent=47 // pred_fallthru
          _
      $region48: #{tpu_custom_call.1} parent=5 // pred_fallthru
        _
      %p630 = scmp.le.s32.totalorder 2, %s25
      // Predicated region
      $region53: #{tpu_custom_call.1} parent=5 // pred_check
        %p631 = pneg %p630
      $region54: #{tpu_custom_call.1} parent=5 // pred_check_branch
        %633 = sbr.rel (%p631) target = $region56
      $region55: #{tpu_custom_call.1} parent=5 // pred_region
        %s634 = ssub.s32 %s25, 2
        // Predicated region
        $region57: #{tpu_custom_call.1} parent=55 // pred_check
          %p635 = pneg %p211
        $region58: #{tpu_custom_call.1} parent=55 // pred_check_branch
          %637 = sbr.rel (%p635) target = $region60
        $region59: #{tpu_custom_call.1} parent=55 // pred_region
          %s638 = sand.u32 %s196, 1
          %s639 = scalar_lea.sflag [#allocation5], %s638
          %s640 = sand.u32 %s196, 1
          %s641 = smul.addr %s640, 8
          %s642 = scalar_lea.vmem [#allocation4], %s641
          %644 = dma.done %s639, 128
        $region60: #{tpu_custom_call.1} parent=55 // pred_fallthru
          _
      $region56: #{tpu_custom_call.1} parent=5 // pred_fallthru
        _
    $region6: #{tpu_custom_call.1} parent=1 // loop_footer
      %s29 = sadd.s32 1, %s25
    $region7: #{tpu_custom_call.1} parent=1 // loop_footer_branch
      %24 = sbr.rel target = $region3
    $region8: #{tpu_custom_call.1} parent=1 // loop_exit
      _
    %645 = vsyncpa [#allocation5], 1
    %s646 = scalar_lea.sflag [#allocation5], 1
    %647 = vsyncpa %s646, 1

</llo_original>
